<compile_context>
chip_gen: v7x
topology: tpu7x:2x2x1
jax: 0.10.0
libtpu: 0.0.40
codegen_flags: <defaults>
</compile_context>

<pallas_src>
import functools

import jax
import jax.numpy as jnp
from jax import lax
from jax.experimental import pallas as pl
from jax.experimental.pallas import tpu as pltpu

_NEG_BIG = -1e30  # finite "minus infinity" sentinel (tiling / online-LSE safe)


def _infonce_lse_kernel(q_ref, k_ref, out_ref, m_ref, l_ref, *,
                        inv_temp, block_q, block_k, keys_resident):
    qi = pl.program_id(0)
    ki = pl.program_id(1)
    nk = pl.num_programs(1)

    @pl.when(ki == 0)
    def _init():
        m_ref[...] = jnp.full(m_ref.shape, -jnp.inf, dtype=m_ref.dtype)
        l_ref[...] = jnp.zeros(l_ref.shape, dtype=l_ref.dtype)

    if keys_resident:
        # Whole key matrix is VMEM-resident; slice this step's tile out of it.
        start = pl.multiple_of(ki * block_k, block_k)
        k = k_ref[pl.ds(start, block_k), :]
    else:
        k = k_ref[...]

    # (block_k, block_q) logits on the MXU: contract the last dims of both
    # operands directly (no materialized transpose); accumulate in f32.  The
    # key axis sits on sublanes and the query axis on lanes, so the running
    # statistics and the per-row output stay lane-dense.
    s = lax.dot_general(
        k, q_ref[...],
        dimension_numbers=(((1,), (1,)), ((), ())),
        preferred_element_type=jnp.float32,
    )
    # Temperature applied to the f32 logits (full precision; no per-step
    # (bq, D) feature-path multiply, no bf16 scaling).
    s = s * inv_temp

    def _online_update(logits):
        m_prev = m_ref[...]
        m_new = jnp.maximum(m_prev, jnp.max(logits, axis=0, keepdims=True))
        alpha = jnp.exp(m_prev - m_new)
        l_ref[...] = alpha * l_ref[...] + jnp.sum(
            jnp.exp(logits - m_new), axis=0, keepdims=True)
        m_ref[...] = m_new

    q_start = qi * block_q
    k_start = ki * block_k
    # Only tiles whose global index ranges intersect can hold diagonal entries.
    overlaps = (k_start < q_start + block_q) & (q_start < k_start + block_k)

    @pl.when(overlaps)
    def _update_masked():
        key_idx = k_start + lax.broadcasted_iota(jnp.int32, s.shape, 0)
        qry_idx = q_start + lax.broadcasted_iota(jnp.int32, s.shape, 1)
        _online_update(jnp.where(key_idx == qry_idx, jnp.float32(_NEG_BIG), s))

    @pl.when(jnp.logical_not(overlaps))
    def _update_unmasked():
        _online_update(s)

    @pl.when(ki == nk - 1)
    def _finalize():
        lse = m_ref[...] + jnp.log(l_ref[...])          # (1, block_q), lane-dense
        out_ref[...] = lse.reshape(out_ref.shape)


def _vmem_capacity_bytes():
    """Per-core VMEM capacity; fallback = 64 MiB (smallest current gen, v7x)."""
    try:
        return int(pltpu.get_tpu_info().vmem_capacity_bytes)
    except Exception:
        return 64 * 1024 * 1024


def _pick_tile(dim, preferred, *, min_align=8, prefer_even_count=False):
    """Largest tile <= `preferred` dividing `dim`, preferring MXU/lane friendly
    alignment (256, then 128, then `min_align`); falls back to the full dim
    (always a legal block).  Non-divisible odd sizes thus still work via the
    full-dimension fallback; pad inputs externally if that block is too big."""
    if dim <= preferred:
        return dim
    divisors = [t for t in range(preferred, 0, -1) if dim % t == 0]
    for align in (256, 128, min_align):
        aligned = [t for t in divisors if t % align == 0]
        if not aligned:
            continue
        best = aligned[0]
        if prefer_even_count:
            # v7x has 2 TensorCores: an even tile count balances the "parallel"
            # q axis.  Only trade down if the tile stays >= 3/4 of the best.
            for t in aligned:
                if (dim // t) % 2 == 0 and 4 * t >= 3 * best:
                    return t
        return best
    return dim


def infonce_loss_pallas(features1, features2, temperature=0.07, *,
                        block_q=1024, block_k=512, keys_resident=None):
    """InfoNCE loss; features1/features2: [B, D]. Returns a scalar f32 loss."""
    b, d = features1.shape
    n = 2 * b
    feats = jnp.concatenate([features1, features2], axis=0)
    itemsize = feats.dtype.itemsize
    # bf16/int8 pack along sublanes: keep the sublane tile a packing multiple.
    min_align = max(8, 32 // itemsize)

    vmem_cap = _vmem_capacity_bytes()
    vmem_limit = (3 * vmem_cap) // 4          # ~96 MiB on v5e/v6e, ~48 MiB on v7x
    budget = int(0.85 * vmem_limit)

    bq = _pick_tile(n, block_q, min_align=min_align, prefer_even_count=True)
    bk = _pick_tile(n, block_k, min_align=min_align)

    if keys_resident is None:
        # Keys fit fully in VMEM (accounting for the default double buffer of
        # the constant-index block) -> single HBM->VMEM DMA for the whole grid.
        keys_resident = (2 * n * d * itemsize) <= (3 * vmem_cap) // 8

    def _footprint(bq_, bk_):
        key_bytes = 2 * n * d * itemsize if keys_resident else 2 * bk_ * d * itemsize
        # double-buffered q tile + keys + f32 logits/exp intermediates.
        return 2 * bq_ * d * itemsize + key_bytes + 3 * bq_ * bk_ * 4

    # Shrink tiles (keeping divisibility and sublane alignment) if the chosen
    # sizes would overflow this generation's VMEM budget.
    while _footprint(bq, bk) > budget and bq % (2 * min_align) == 0:
        bq //= 2
    while _footprint(bq, bk) > budget and bk % (2 * min_align) == 0:
        bk //= 2

    num_q = n // bq
    num_k = n // bk
    inv_temp = 1.0 / float(temperature)

    kernel = functools.partial(
        _infonce_lse_kernel,
        inv_temp=inv_temp, block_q=bq, block_k=bk, keys_resident=keys_resident)

    if keys_resident:
        key_spec = pl.BlockSpec((n, d), lambda qi, ki: (0, 0))    # DMA'd once
        key_traffic = n * d * itemsize
    else:
        key_spec = pl.BlockSpec((bk, d), lambda qi, ki: (ki, 0))  # streamed
        key_traffic = num_q * n * d * itemsize

    lse = pl.pallas_call(
        kernel,
        out_shape=jax.ShapeDtypeStruct((num_q, 1, bq), jnp.float32),
        grid_spec=pltpu.PrefetchScalarGridSpec(
            num_scalar_prefetch=0,
            grid=(num_q, num_k),
            in_specs=[
                pl.BlockSpec((bq, d), lambda qi, ki: (qi, 0)),  # query tile
                key_spec,                                       # keys
            ],
            out_specs=pl.BlockSpec((1, 1, bq), lambda qi, ki: (qi, 0, 0)),
            scratch_shapes=[
                pltpu.VMEM((1, bq), jnp.float32),  # running max (lane-dense)
                pltpu.VMEM((1, bq), jnp.float32),  # running sum-exp
            ],
        ),
        compiler_params=pltpu.CompilerParams(
            dimension_semantics=("parallel", "arbitrary"),
            vmem_limit_bytes=vmem_limit,
        ),
        cost_estimate=pl.CostEstimate(
            flops=2 * n * n * d,
            transcendentals=n * n,
            bytes_accessed=n * d * itemsize + key_traffic + n * 4,
        ),
    )(feats, feats)

    # Positive logit: dot(f1_i, f2_i) / T, identical for row i and row i+B.
    # Tiny O(B*D) fused op outside the kernel (frees the partner operand's
    # VMEM and removes the finalize-path upcasts from the kernel).
    pos = jnp.sum(features1.astype(jnp.float32) * features2.astype(jnp.float32),
                  axis=-1) * inv_temp
    per_row = lse.reshape(n) - jnp.concatenate([pos, pos], axis=0)
    return jnp.mean(per_row)


def infonce_loss_ref(features1, features2, temperature=0.07):
    """Pure-JAX reference mirroring the PyTorch module."""
    bsz = features1.shape[0]
    feats = jnp.concatenate([features1, features2], axis=0).astype(jnp.float32)
    sim = feats @ feats.T / temperature
    n = 2 * bsz
    sim = jnp.where(jnp.eye(n, dtype=bool), -jnp.inf, sim)
    labels = jnp.concatenate([jnp.arange(bsz) + bsz, jnp.arange(bsz)])
    logp = jax.nn.log_softmax(sim, axis=-1)
    return -jnp.mean(logp[jnp.arange(n), labels])


if __name__ == "__main__":
    key = jax.random.PRNGKey(0)
    k1, k2, k3, k4 = jax.random.split(key, 4)

    # Case 1: multi-tile grid (4 x 4); auto path (keys VMEM-resident here).
    B, D = 64, 128
    f1 = jax.random.normal(k1, (B, D), dtype=jnp.float32)
    f2 = jax.random.normal(k2, (B, D), dtype=jnp.float32)
    ref = infonce_loss_ref(f1, f2, temperature=0.07)
    out_res = jax.block_until_ready(
        infonce_loss_pallas(f1, f2, temperature=0.07, block_q=32, block_k=32))
    assert jnp.allclose(out_res, ref, rtol=1e-4, atol=1e-4), (out_res, ref)

    # Case 2: same problem, force the streamed-keys (online-LSE over key tiles)
    # path to exercise both BlockSpec variants.
    out_str = jax.block_until_ready(
        infonce_loss_pallas(f1, f2, temperature=0.07, block_q=32, block_k=32,
                            keys_resident=False))
    assert jnp.allclose(out_str, ref, rtol=1e-4, atol=1e-4), (out_str, ref)

    # Case 3: degenerate single-block (1 x 1 grid) path.
    B2, D2 = 8, 32
    g1 = jax.random.normal(k3, (B2, D2), dtype=jnp.float32)
    g2 = jax.random.normal(k4, (B2, D2), dtype=jnp.float32)
    out_small = jax.block_until_ready(infonce_loss_pallas(g1, g2))
    ref_small = infonce_loss_ref(g1, g2)
    assert jnp.allclose(out_small, ref_small, rtol=1e-4, atol=1e-4), (out_small, ref_small)

    # Case 4: bf16 features (L2-normalized, as in typical contrastive setups):
    # exercises the bf16 MXU path with the f32-logit temperature scaling.
    h1 = f1 / jnp.linalg.norm(f1, axis=-1, keepdims=True)
    h2 = f2 / jnp.linalg.norm(f2, axis=-1, keepdims=True)
    h1b, h2b = h1.astype(jnp.bfloat16), h2.astype(jnp.bfloat16)
    out_bf16 = jax.block_until_ready(
        infonce_loss_pallas(h1b, h2b, temperature=0.07, block_q=32, block_k=32))
    ref_bf16 = infonce_loss_ref(h1b, h2b, temperature=0.07)
    assert jnp.allclose(out_bf16, ref_bf16, rtol=3e-2, atol=3e-2), (out_bf16, ref_bf16)

    print("KERNEL_OK")
</pallas_src>

<mosaic_0001>
module attributes {stable_mosaic.version = 11 : i64} {
  func.func @_infonce_lse_kernel(%arg0: i32, %arg1: i32, %arg2: memref<32x128xf32, #tpu.memory_space<vmem>>, %arg3: memref<128x128xf32, #tpu.memory_space<vmem>>, %arg4: memref<1x1x32xf32, #tpu.memory_space<vmem>>, %arg5: memref<1x32xf32, #tpu.memory_space<vmem>>, %arg6: memref<1x32xf32, #tpu.memory_space<vmem>>) attributes {dimension_semantics = [#tpu.dimension_semantics<parallel>, #tpu.dimension_semantics<arbitrary>], iteration_bounds = array<i64: 4, 4>, scalar_prefetch = 0 : i64, scratch_operands = 2 : i64, tpu.core_type = #tpu.core_type<tc>, window_params = [{transform_indices = @transform_0, window_bounds = array<i64: 32, 128>}, {pipeline_mode = #tpu.pipeline_mode<synchronous>, transform_indices = @transform_1, window_bounds = array<i64: 128, 128>}, {transform_indices = @transform_2, window_bounds = array<i64: 1, 1, 32>}]} {
    %c0_i32 = arith.constant 0 : i32
    %0 = arith.cmpi eq, %arg1, %c0_i32 : i32
    %1 = arith.extui %0 : i1 to i32
    %c0_i32_0 = arith.constant 0 : i32
    %2 = arith.cmpi ne, %1, %c0_i32_0 : i32
    scf.if %2 {
      %cst_11 = arith.constant 0xFF800000 : f32
      %26 = vector.broadcast %cst_11 : f32 to vector<1x32xf32>
      %c0_12 = arith.constant 0 : index
      %c0_13 = arith.constant 0 : index
      %27 = vector.load %arg5[%c0_12, %c0_13] : memref<1x32xf32, #tpu.memory_space<vmem>>, vector<1x32xf32>
      tpu.vector_store %arg5[%c0_12, %c0_13], %26 {strides = array<i32>} : memref<1x32xf32, #tpu.memory_space<vmem>>, vector<1x32xf32>,
      %cst_14 = arith.constant 0.000000e+00 : f32
      %28 = vector.broadcast %cst_14 : f32 to vector<1x32xf32>
      %c0_15 = arith.constant 0 : index
      %c0_16 = arith.constant 0 : index
      %29 = vector.load %arg6[%c0_15, %c0_16] : memref<1x32xf32, #tpu.memory_space<vmem>>, vector<1x32xf32>
      tpu.vector_store %arg6[%c0_15, %c0_16], %28 {strides = array<i32>} : memref<1x32xf32, #tpu.memory_space<vmem>>, vector<1x32xf32>,
    } else {
    }
    %c32_i32 = arith.constant 32 : i32
    %3 = arith.muli %arg1, %c32_i32 : i32
    %4 = tpu.assume_multiple %3, 32 : i32
    %5 = arith.index_cast %4 : i32 to index
    %c0 = arith.constant 0 : index
    %6 = vector.load %arg3[%5, %c0] : memref<128x128xf32, #tpu.memory_space<vmem>>, vector<32x128xf32>
    %c0_1 = arith.constant 0 : index
    %c0_2 = arith.constant 0 : index
    %7 = vector.load %arg2[%c0_1, %c0_2] : memref<32x128xf32, #tpu.memory_space<vmem>>, vector<32x128xf32>
    %cst = arith.constant dense<0.000000e+00> : vector<32x32xf32>
    %8 = tpu.matmul %6, %7, %cst {dimension_numbers = #tpu.dot_dimension_numbers<[1], [1], [0], [0], [0, 0, 1, 0], [], []>} : vector<32x128xf32>, vector<32x128xf32>, vector<32x32xf32> -> vector<32x32xf32>
    %cst_3 = arith.constant 14.2857141 : f32
    %9 = vector.broadcast %cst_3 : f32 to vector<32x32xf32>
    %10 = arith.mulf %8, %9 : vector<32x32xf32>
    %c32_i32_4 = arith.constant 32 : i32
    %11 = arith.muli %arg0, %c32_i32_4 : i32
    %c32_i32_5 = arith.constant 32 : i32
    %12 = arith.muli %arg1, %c32_i32_5 : i32
    %c32_i32_6 = arith.constant 32 : i32
    %13 = arith.addi %11, %c32_i32_6 : i32
    %14 = arith.cmpi slt, %12, %13 : i32
    %c32_i32_7 = arith.constant 32 : i32
    %15 = arith.addi %12, %c32_i32_7 : i32
    %16 = arith.cmpi slt, %11, %15 : i32
    %17 = arith.andi %14, %16 : i1
    %18 = arith.extui %17 : i1 to i32
    %c0_i32_8 = arith.constant 0 : i32
    %19 = arith.cmpi ne, %18, %c0_i32_8 : i32
    scf.if %19 {
      %26 = tpu.iota {dimensions = array<i32: 0>} : vector<32x32xi32>
      %27 = vector.broadcast %12 : i32 to vector<32x32xi32>
      %28 = arith.addi %27, %26 : vector<32x32xi32>
      %29 = tpu.iota {dimensions = array<i32: 1>} : vector<32x32xi32>
      %30 = vector.broadcast %11 : i32 to vector<32x32xi32>
      %31 = arith.addi %30, %29 : vector<32x32xi32>
      %32 = arith.cmpi eq, %28, %31 : vector<32x32xi32>
      %cst_11 = arith.constant -1.000000e+30 : f32
      %33 = vector.broadcast %cst_11 : f32 to vector<32x32xf32>
      %34 = arith.select %32, %33, %10 : vector<32x32xi1>, vector<32x32xf32>
      %c0_12 = arith.constant 0 : index
      %c0_13 = arith.constant 0 : index
      %35 = vector.load %arg5[%c0_12, %c0_13] : memref<1x32xf32, #tpu.memory_space<vmem>>, vector<1x32xf32>
      %cst_14 = arith.constant dense<0xFF800000> : vector<32xf32>
      %36 = vector.multi_reduction <maximumf>, %34, %cst_14 [0] : vector<32x32xf32> to vector<32xf32>
      %37 = vector.shape_cast %36 : vector<32xf32> to vector<1x32xf32>
      %38 = arith.maximumf %35, %37 : vector<1x32xf32>
      %39 = arith.subf %35, %38 : vector<1x32xf32>
      %40 = math.exp %39 : vector<1x32xf32>
      %c0_15 = arith.constant 0 : index
      %c0_16 = arith.constant 0 : index
      %41 = vector.load %arg6[%c0_15, %c0_16] : memref<1x32xf32, #tpu.memory_space<vmem>>, vector<1x32xf32>
      %42 = arith.mulf %40, %41 : vector<1x32xf32>
      %43 = vector.broadcast %38 : vector<1x32xf32> to vector<32x32xf32>
      %44 = arith.subf %34, %43 : vector<32x32xf32>
      %45 = math.exp %44 : vector<32x32xf32>
      %cst_17 = arith.constant dense<0.000000e+00> : vector<32xf32>
      %46 = vector.multi_reduction <add>, %45, %cst_17 [0] : vector<32x32xf32> to vector<32xf32>
      %47 = vector.shape_cast %46 : vector<32xf32> to vector<1x32xf32>
      %48 = arith.addf %42, %47 : vector<1x32xf32>
      %c0_18 = arith.constant 0 : index
      %c0_19 = arith.constant 0 : index
      %49 = vector.load %arg6[%c0_18, %c0_19] : memref<1x32xf32, #tpu.memory_space<vmem>>, vector<1x32xf32>
      tpu.vector_store %arg6[%c0_18, %c0_19], %48 {strides = array<i32>} : memref<1x32xf32, #tpu.memory_space<vmem>>, vector<1x32xf32>,
      %c0_20 = arith.constant 0 : index
      %c0_21 = arith.constant 0 : index
      %50 = vector.load %arg5[%c0_20, %c0_21] : memref<1x32xf32, #tpu.memory_space<vmem>>, vector<1x32xf32>
      tpu.vector_store %arg5[%c0_20, %c0_21], %38 {strides = array<i32>} : memref<1x32xf32, #tpu.memory_space<vmem>>, vector<1x32xf32>,
    } else {
    }
    %true = arith.constant true
    %20 = arith.xori %17, %true : i1
    %21 = arith.extui %20 : i1 to i32
    %c0_i32_9 = arith.constant 0 : i32
    %22 = arith.cmpi ne, %21, %c0_i32_9 : i32
    scf.if %22 {
      %c0_11 = arith.constant 0 : index
      %c0_12 = arith.constant 0 : index
      %26 = vector.load %arg5[%c0_11, %c0_12] : memref<1x32xf32, #tpu.memory_space<vmem>>, vector<1x32xf32>
      %cst_13 = arith.constant dense<0xFF800000> : vector<32xf32>
      %27 = vector.multi_reduction <maximumf>, %10, %cst_13 [0] : vector<32x32xf32> to vector<32xf32>
      %28 = vector.shape_cast %27 : vector<32xf32> to vector<1x32xf32>
      %29 = arith.maximumf %26, %28 : vector<1x32xf32>
      %30 = arith.subf %26, %29 : vector<1x32xf32>
      %31 = math.exp %30 : vector<1x32xf32>
      %c0_14 = arith.constant 0 : index
      %c0_15 = arith.constant 0 : index
      %32 = vector.load %arg6[%c0_14, %c0_15] : memref<1x32xf32, #tpu.memory_space<vmem>>, vector<1x32xf32>
      %33 = arith.mulf %31, %32 : vector<1x32xf32>
      %34 = vector.broadcast %29 : vector<1x32xf32> to vector<32x32xf32>
      %35 = arith.subf %10, %34 : vector<32x32xf32>
      %36 = math.exp %35 : vector<32x32xf32>
      %cst_16 = arith.constant dense<0.000000e+00> : vector<32xf32>
      %37 = vector.multi_reduction <add>, %36, %cst_16 [0] : vector<32x32xf32> to vector<32xf32>
      %38 = vector.shape_cast %37 : vector<32xf32> to vector<1x32xf32>
      %39 = arith.addf %33, %38 : vector<1x32xf32>
      %c0_17 = arith.constant 0 : index
      %c0_18 = arith.constant 0 : index
      %40 = vector.load %arg6[%c0_17, %c0_18] : memref<1x32xf32, #tpu.memory_space<vmem>>, vector<1x32xf32>
      tpu.vector_store %arg6[%c0_17, %c0_18], %39 {strides = array<i32>} : memref<1x32xf32, #tpu.memory_space<vmem>>, vector<1x32xf32>,
      %c0_19 = arith.constant 0 : index
      %c0_20 = arith.constant 0 : index
      %41 = vector.load %arg5[%c0_19, %c0_20] : memref<1x32xf32, #tpu.memory_space<vmem>>, vector<1x32xf32>
      tpu.vector_store %arg5[%c0_19, %c0_20], %29 {strides = array<i32>} : memref<1x32xf32, #tpu.memory_space<vmem>>, vector<1x32xf32>,
    } else {
    }
    %c3_i32 = arith.constant 3 : i32
    %23 = arith.cmpi eq, %arg1, %c3_i32 : i32
    %24 = arith.extui %23 : i1 to i32
    %c0_i32_10 = arith.constant 0 : i32
    %25 = arith.cmpi ne, %24, %c0_i32_10 : i32
    scf.if %25 {
      %c0_11 = arith.constant 0 : index
      %c0_12 = arith.constant 0 : index
      %26 = vector.load %arg5[%c0_11, %c0_12] : memref<1x32xf32, #tpu.memory_space<vmem>>, vector<1x32xf32>
      %c0_13 = arith.constant 0 : index
      %c0_14 = arith.constant 0 : index
      %27 = vector.load %arg6[%c0_13, %c0_14] : memref<1x32xf32, #tpu.memory_space<vmem>>, vector<1x32xf32>
      %28 = math.log %27 : vector<1x32xf32>
      %29 = arith.addf %26, %28 : vector<1x32xf32>
      %30 = vector.shape_cast %29 : vector<1x32xf32> to vector<1x1x32xf32>
      %c0_15 = arith.constant 0 : index
      %c0_16 = arith.constant 0 : index
      %c0_17 = arith.constant 0 : index
      %31 = vector.load %arg4[%c0_15, %c0_16, %c0_17] : memref<1x1x32xf32, #tpu.memory_space<vmem>>, vector<1x1x32xf32>
      tpu.vector_store %arg4[%c0_15, %c0_16, %c0_17], %30 {strides = array<i32>} : memref<1x1x32xf32, #tpu.memory_space<vmem>>, vector<1x1x32xf32>,
    } else {
    }
    return
  }
  func.func @transform_0(%arg0: i32, %arg1: i32) -> (i32, i32) {
    %c0_i32 = arith.constant 0 : i32
    %c0_i32_0 = arith.constant 0 : i32
    return %arg0, %c0_i32 : i32, i32
  }
  func.func @transform_1(%arg0: i32, %arg1: i32) -> (i32, i32) {
    %c0_i32 = arith.constant 0 : i32
    %c0_i32_0 = arith.constant 0 : i32
    %c0_i32_1 = arith.constant 0 : i32
    return %c0_i32, %c0_i32_0 : i32, i32
  }
  func.func @transform_2(%arg0: i32, %arg1: i32) -> (i32, i32, i32) {
    %c0_i32 = arith.constant 0 : i32
    %c0_i32_0 = arith.constant 0 : i32
    %c0_i32_1 = arith.constant 0 : i32
    return %arg0, %c0_i32, %c0_i32_0 : i32, i32, i32
  }
}

</mosaic_0001>

<llo_original>
// kernel: tpu_custom_call.1
$region0: #{tpu_custom_call.1}
  #allocation0 [shape = 'u32[]', space=smem, size = 0x4, offset = 0x4, fixed_abs, tag = 'smem constant byte address 0x4 - core index']
  #allocation1 [shape = 'u32[144,128]{1,0:T(1,128)}', space=vmem, size = 0x12000, scoped, tag = 'internal scratch']
  #allocation2 [shape = 'f32[1,32]{1,0:T(1,128)}', space=vmem, size = 0x200, scoped, tag = 'scratch operand']
  #allocation3 [shape = 'f32[1,32]{1,0:T(1,128)}', space=vmem, size = 0x200, scoped, tag = 'scratch operand']
  %s0 = inlined_call_operand.hbm [shape: f32[128,128], index: 0, kind: input, shape index: {}]
  %s1 = inlined_call_operand.hbm [shape: f32[128,128], index: 1, kind: input, shape index: {}]
  %s2 = inlined_call_operand.hbm [shape: f32[4,1,32], index: 2, kind: output, shape index: {}]
  %s3 = sld [smem:[#allocation0]]
  $region65: #{tpu_custom_call.1} parent=0
    _
  %s5 = ssub.s32 1, %s3
  %s6 = scalar_select 0, %s5, %s3
  $region1: #{tpu_custom_call.1} parent=0
    #allocation4 [shape = 'u8[32768]{0}', space=vmem, size = 0x8000, scoped, tag = 'input window, operand 0']
    #allocation5 [shape = 's32[2]{0}', space=sflag, size = 0x8, scoped, tag = 'scoped memory for tpu_custom_call.1']
    #allocation6 [shape = 's32[2]{0}', space=sflag, size = 0x8, scoped, tag = 'scoped memory for tpu_custom_call.1']
    #allocation7 [shape = 'u8[65536]{0}', space=vmem, size = 0x10000, scoped, tag = 'input window, operand 1, single buffered']
    #allocation8 [shape = 's32[1]{0}', space=sflag, size = 0x4, scoped, tag = 'scoped memory for tpu_custom_call.1']
    #allocation9 [shape = 'u8[1024]{0}', space=vmem, size = 0x400, scoped, tag = 'output window, operand 0']
    %7 = vsyncpa [#allocation5], 0
    %s8 = scalar_lea.sflag [#allocation5], 1
    %9 = vsyncpa %s8, 0
    %10 = vsyncpa [#allocation8], 0
    %11 = vsyncpa [#allocation6], 0
    %s12 = scalar_lea.sflag [#allocation6], 1
    %13 = vsyncpa %s12, 0
    loop: start=0, step=1, limit=18
    $region2: #{tpu_custom_call.1} parent=1 // loop_pre_header
      _
    $region3: #{tpu_custom_call.1} parent=1 // loop_header
      %s15 = sphi 0, %s19
      %p16 = scmp.ge.s32.totalorder %s15, 18
      %s22 = sphi 0, %s34
      %s23 = sphi 0, %s30
      %s24 = sphi 0, %s22
      %s25 = sphi 0, %s23
      %s26 = sphi 0, %s24
      %s27 = sphi 0, %s25
      %s37 = sphi 0, %s39
      %s40 = sphi 0, %s37
      %s41 = sphi 0, %s40
      %s57 = sphi 0, %s41
      %s61 = sphi 0, %s61
      %s63 = sphi 0, %s61
      %s64 = sphi 0, %s63
      %s78 = sphi 0, %s64
      %s84 = sphi 0, %s86
      %s87 = sphi 0, %s84
      %s88 = sphi 0, %s87
      %s104 = sphi 0, %s88
    $region4: #{tpu_custom_call.1} parent=1 // loop_header_branch
      %18 = sbr.rel (%p16) target = $region8
    $region5: #{tpu_custom_call.1} parent=1 // loop_body
      %s20 = ssub.s32 %s15, 1
      %s21 = ssub.s32 %s15, 2
      %s28 = sadd.s32 1, %s23
      %p29 = scmp.ge.s32.totalorder %s28, 4
      %s30 = scalar_select %p29, 0, %s28
      %s31 = sadd.s32 1, %s22
      %s32 = scalar_select %p29, %s31, %s22
      %p33 = scmp.ge.s32.totalorder %s32, 4
      %s34 = scalar_select %p33, 0, %s32
      %s35 = ssub.s32 %s22, %s34
      %p36 = scmp.eq.s32.totalorder %s35, 0
      %s38 = sadd.s32 %s37, 1
      %s39 = scalar_select %p36, %s37, %s38
      %p42 = pneg %p36
      %p43 = scmp.eq.s32.totalorder %s15, 15
      %p44 = por %p42, %p43
      %p45 = scmp.ne.s32.totalorder %s37, %s40
      %p46 = scmp.eq.s32.totalorder %s15, 0
      %p47 = por %p45, %p46
      %p48 = scmp.ne.s32.totalorder %s37, %s40
      %p49 = scmp.eq.s32.totalorder %s20, 15
      %p50 = por %p48, %p49
      %p51 = scmp.ne.s32.totalorder %s40, %s41
      %p52 = scmp.eq.s32.totalorder %s20, 0
      %p53 = por %p51, %p52
      %p54 = scmp.ne.s32.totalorder %s40, %s41
      %p55 = scmp.eq.s32.totalorder %s21, 15
      %p56 = por %p54, %p55
      %p58 = scmp.ne.s32.totalorder %s41, %s57
      %p59 = scmp.eq.s32.totalorder %s21, 0
      %p60 = por %p58, %p59
      %s62 = sadd.s32 %s61, 1
      %p65 = scmp.eq.s32.totalorder %s15, 15
      %p66 = scmp.ne.s32.totalorder %s61, %s63
      %p67 = scmp.eq.s32.totalorder %s15, 0
      %p68 = por %p66, %p67
      %p69 = scmp.ne.s32.totalorder %s61, %s63
      %p70 = scmp.eq.s32.totalorder %s20, 15
      %p71 = por %p69, %p70
      %p72 = scmp.ne.s32.totalorder %s63, %s64
      %p73 = scmp.eq.s32.totalorder %s20, 0
      %p74 = por %p72, %p73
      %p75 = scmp.ne.s32.totalorder %s63, %s64
      %p76 = scmp.eq.s32.totalorder %s21, 15
      %p77 = por %p75, %p76
      %p79 = scmp.ne.s32.totalorder %s64, %s78
      %p80 = scmp.eq.s32.totalorder %s21, 0
      %p81 = por %p79, %p80
      %s82 = ssub.s32 %s22, %s34
      %p83 = scmp.eq.s32.totalorder %s82, 0
      %s85 = sadd.s32 %s84, 1
      %s86 = scalar_select %p83, %s84, %s85
      %p89 = pneg %p83
      %p90 = scmp.eq.s32.totalorder %s15, 15
      %p91 = por %p89, %p90
      %p92 = scmp.ne.s32.totalorder %s84, %s87
      %p93 = scmp.eq.s32.totalorder %s15, 0
      %p94 = por %p92, %p93
      %p95 = scmp.ne.s32.totalorder %s84, %s87
      %p96 = scmp.eq.s32.totalorder %s20, 15
      %p97 = por %p95, %p96
      %p98 = scmp.ne.s32.totalorder %s87, %s88
      %p99 = scmp.eq.s32.totalorder %s20, 0
      %p100 = por %p98, %p99
      %p101 = scmp.ne.s32.totalorder %s87, %s88
      %p102 = scmp.eq.s32.totalorder %s21, 15
      %p103 = por %p101, %p102
      %p105 = scmp.ne.s32.totalorder %s88, %s104
      %p106 = scmp.eq.s32.totalorder %s21, 0
      %p107 = por %p105, %p106
      %p108 = scmp.le.s32.totalorder 1, %s15
      %p109 = scmp.lt.s32.totalorder %s15, 17
      %p110 = pnand %p108, %p109
      %p111 = pneg %p110
      // Predicated region
      $region9: #{tpu_custom_call.1} parent=5 // pred_check
        _
      $region10: #{tpu_custom_call.1} parent=5 // pred_check_branch
        %113 = sbr.rel (%p110) target = $region12
      $region11: #{tpu_custom_call.1} parent=5 // pred_region
        %s114 = ssub.s32 %s15, 1
        // Predicated region
        $region13: #{tpu_custom_call.1} parent=11 // pred_check
          %p115 = pneg %p74
        $region14: #{tpu_custom_call.1} parent=11 // pred_check_branch
          %117 = sbr.rel (%p115) target = $region16
        $region15: #{tpu_custom_call.1} parent=11 // pred_region
          %s119 = ssub.s32 2048, 2048
          %120 = vsyncadd [#allocation8], %s119
          %s121 = sshll.u32 [#allocation7], 4
          %s122 = int_to_ptr.vmem [resolvable:$true] %s121
          %127 = dma.hbm_to_vmem [thread:$0]  %s1, 2048, %s122, [#allocation8], 128, 128, 8
        $region16: #{tpu_custom_call.1} parent=11 // pred_fallthru
          _
      $region12: #{tpu_custom_call.1} parent=5 // pred_fallthru
        _
      %p128 = scmp.lt.s32.totalorder %s15, 16
      // Predicated region
      $region17: #{tpu_custom_call.1} parent=5 // pred_check
        %p129 = pneg %p128
      $region18: #{tpu_custom_call.1} parent=5 // pred_check_branch
        %131 = sbr.rel (%p129) target = $region20
      $region19: #{tpu_custom_call.1} parent=5 // pred_region
        // Predicated region
        $region21: #{tpu_custom_call.1} parent=19 // pred_check
          %p132 = pneg %p47
        $region22: #{tpu_custom_call.1} parent=19 // pred_check_branch
          %134 = sbr.rel (%p132) target = $region24
        $region23: #{tpu_custom_call.1} parent=19 // pred_region
          %s135 = sand.u32 %s37, 1
          %s136 = scalar_lea.sflag [#allocation5], %s135
          %s137 = sand.u32 %s37, 1
          %s138 = smul.addr %s137, 32
          %s139 = scalar_lea.vmem [#allocation4], %s138
          %s140 = smul.u32 4, %s22
          %s142 = ssub.s32 512, 512
          %143 = vsyncadd %s136, %s142
          %s144 = smul.addr %s140, 128
          %s145 = scalar_lea.hbm %s0, %s144
          %s146 = sshll.u32 %s139, 4
          %s147 = int_to_ptr.vmem [resolvable:$true] %s146
          %152 = dma.hbm_to_vmem [thread:$0]  %s145, 512, %s147, %s136, 128, 128, 8
        $region24: #{tpu_custom_call.1} parent=19 // pred_fallthru
          _
      $region20: #{tpu_custom_call.1} parent=5 // pred_fallthru
        _
      %p153 = scmp.le.s32.totalorder 1, %s15
      %p154 = scmp.lt.s32.totalorder %s15, 17
      %p155 = pnand %p153, %p154
      %p156 = pneg %p155
      // Predicated region
      $region25: #{tpu_custom_call.1} parent=5 // pred_check
        _
      $region26: #{tpu_custom_call.1} parent=5 // pred_check_branch
        %158 = sbr.rel (%p155) target = $region28
      $region27: #{tpu_custom_call.1} parent=5 // pred_region
        %s159 = ssub.s32 %s15, 1
        %s160 = sand.u32 %s40, 1
        %s161 = scalar_lea.sflag [#allocation5], %s160
        %s162 = sand.u32 %s40, 1
        %s163 = smul.addr %s162, 32
        %s164 = scalar_lea.vmem [#allocation4], %s163
        // Predicated region
        $region29: #{tpu_custom_call.1} parent=27 // pred_check
          %p165 = pneg %p53
        $region30: #{tpu_custom_call.1} parent=27 // pred_check_branch
          %167 = sbr.rel (%p165) target = $region32
        $region31: #{tpu_custom_call.1} parent=27 // pred_region
          %168 = dma.done %s161, 512
        $region32: #{tpu_custom_call.1} parent=27 // pred_fallthru
          _
        // Predicated region
        $region33: #{tpu_custom_call.1} parent=27 // pred_check
          %p169 = pneg %p74
        $region34: #{tpu_custom_call.1} parent=27 // pred_check_branch
          %171 = sbr.rel (%p169) target = $region36
        $region35: #{tpu_custom_call.1} parent=27 // pred_region
          %172 = dma.done [#allocation8], 2048
        $region36: #{tpu_custom_call.1} parent=27 // pred_fallthru
          _
        %s173 = sand.u32 %s40, 1
        %s174 = scalar_lea.sflag [#allocation5], %s173
        %s175 = sand.u32 %s40, 1
        %s176 = smul.addr %s175, 32
        %s177 = scalar_lea.vmem [#allocation4], %s176
        %p178 = pneg %p53
        %p179 = pneg %p50
        %p180 = pneg %p74
        %p181 = pneg %p71
        %p182 = pneg %p100
        %p183 = pneg %p97
        %s184 = sand.u32 %s87, 1
        %s185 = scalar_lea.sflag [#allocation6], %s184
        %s186 = sand.u32 %s87, 1
        %s187 = scalar_lea.vmem [#allocation9], %s186
        %s188 = smul.u32 4, %s24
        %p189 = scmp.eq.s32.totalorder %s25, 0
        // Predicated region
        $region37: #{tpu_custom_call.1} parent=27 // pred_check
          %p190 = pneg %p189
        $region38: #{tpu_custom_call.1} parent=27 // pred_check_branch
          %192 = sbr.rel (%p190) target = $region40
        $region39: #{tpu_custom_call.1} parent=27 // pred_region
          %vm193 = vcmask 253952
          %194 = vst.msk [vmem:[#allocation2] sm:$0x1] %vm193, -inf
          %195 = vst.msk [vmem:[#allocation3] sm:$0x1] %vm193, 0.0
        $region40: #{tpu_custom_call.1} parent=27 // pred_fallthru
          _
        %s196 = smul.u32 %s25, 32
        %s197 = scalar_lea.vmem [#allocation7], %s196
        %v198 = vld [vmem:[%s197] sm:$0xff]
        %v199 = vld [vmem:[%s197 + $0x8] sm:$0xff]
        %v200 = vld [vmem:[%s197 + $0x10] sm:$0xff]
        %v201 = vld [vmem:[%s197 + $0x18] sm:$0xff]
        %v202 = vld [vmem:[%s164] sm:$0xff]
        %v203 = vld [vmem:[%s164 + $0x8] sm:$0xff]
        %v204 = vld [vmem:[%s164 + $0x10] sm:$0xff]
        %v205 = vld [vmem:[%s164 + $0x18] sm:$0xff]
        %206 = vmatprep.subr.mxu0 0.0
        %207 = vmatpush1.xpose.msra.mxu0 %v202
        %208 = vmatprep.subr.mxu0 0.0
        %209 = vmatpush1.xpose.msra.mxu0 %v203
        %210 = vmatprep.subr.mxu0 0.0
        %211 = vmatpush1.xpose.msra.mxu0 %v204
        %212 = vmatprep.subr.mxu0 0.0
        %213 = vmatpush1.xpose.msra.mxu0 %v205
        %214 = vmatprep.subr.mxu0 0.0
        %215 = vmatpush1.xpose.msra.mxu0 0.0
        %216 = vmatprep.subr.mxu0 0.0
        %217 = vmatpush1.xpose.msra.mxu0 0.0
        %218 = vmatprep.subr.mxu0 0.0
        %219 = vmatpush1.xpose.msra.mxu0 0.0
        %220 = vmatprep.subr.mxu0 0.0
        %221 = vmatpush1.xpose.msra.mxu0 0.0
        %222 = vmatprep.subr.mxu0 0.0
        %223 = vmatpush1.xpose.msra.mxu0 0.0
        %224 = vmatprep.subr.mxu0 0.0
        %225 = vmatpush1.xpose.msra.mxu0 0.0
        %226 = vmatprep.subr.mxu0 0.0
        %227 = vmatpush1.xpose.msra.mxu0 0.0
        %228 = vmatprep.subr.mxu0 0.0
        %229 = vmatpush1.xpose.msra.mxu0 0.0
        %230 = vmatprep.subr.mxu0 0.0
        %231 = vmatpush1.xpose.msra.mxu0 0.0
        %232 = vmatprep.subr.mxu0 0.0
        %233 = vmatpush1.xpose.msra.mxu0 0.0
        %234 = vmatprep.subr.mxu0 0.0
        %235 = vmatpush1.xpose.msra.mxu0 0.0
        %236 = vmatprep.subr.mxu0 0.0
        %237 = vmatpush1.xpose.msra.mxu0 0.0
        %238 = vmatprep.subr.mxu0 0.0
        %239 = vmatpush1.xpose.msra.mxu0 0.0
        %240 = vmatprep.subr.mxu0 0.0
        %241 = vmatpush1.xpose.msra.mxu0 0.0
        %242 = vmatprep.subr.mxu0 0.0
        %243 = vmatpush1.xpose.msra.mxu0 0.0
        %244 = vmatprep.subr.mxu0 0.0
        %245 = vmatpush1.xpose.msra.mxu0 0.0
        %246 = vmatprep.subr.mxu0 0.0
        %247 = vmatpush1.xpose.msra.mxu0 0.0
        %248 = vmatprep.subr.mxu0 0.0
        %249 = vmatpush1.xpose.msra.mxu0 0.0
        %250 = vmatprep.subr.mxu0 0.0
        %251 = vmatpush1.xpose.msra.mxu0 0.0
        %252 = vmatprep.subr.mxu0 0.0
        %253 = vmatpush1.xpose.msra.mxu0 0.0
        %254 = vmatprep.subr.mxu0 0.0
        %255 = vmatpush1.xpose.msra.mxu0 0.0
        %256 = vmatprep.subr.mxu0 0.0
        %257 = vmatpush1.xpose.msra.mxu0 0.0
        %258 = vmatprep.subr.mxu0 0.0
        %259 = vmatpush1.xpose.msra.mxu0 0.0
        %260 = vmatprep.subr.mxu0 0.0
        %261 = vmatpush1.xpose.msra.mxu0 0.0
        %262 = vmatprep.subr.mxu0 0.0
        %263 = vmatpush1.xpose.msra.mxu0 0.0
        %264 = vmatprep.subr.mxu0 0.0
        %265 = vmatpush1.xpose.msra.mxu0 0.0
        %266 = vmatprep.subr.mxu0 0.0
        %267 = vmatpush1.xpose.msra.mxu0 0.0
        %268 = vmatprep.subr.mxu0 0.0
        %269 = vmatpush1.xpose.msra.mxu0 0.0
        %270 = vmatprep.mubr.f32.mxu0 0.0
        %271 = vmatmul.mubr.f32.gmra.mrb[0].mxu0 %v198
        %v272 = vpop.f32.mrb[0].mxu0
        %v273 = vadd.f32 0.0, %v272
        %v274 = vpop.f32.mrb[0].mxu0
        %275 = vmatprep.mubr.f32.mxu0 0.0
        %276 = vmatmul.mubr.f32.gmra.mrb[0].mxu0 %v199
        %v277 = vpop.f32.mrb[0].mxu0
        %v278 = vadd.f32 0.0, %v277
        %v279 = vpop.f32.mrb[0].mxu0
        %280 = vmatprep.mubr.f32.mxu0 0.0
        %281 = vmatmul.mubr.f32.gmra.mrb[0].mxu0 %v200
        %v282 = vpop.f32.mrb[0].mxu0
        %v283 = vadd.f32 0.0, %v282
        %v284 = vpop.f32.mrb[0].mxu0
        %285 = vmatprep.mubr.f32.mxu0 0.0
        %286 = vmatmul.mubr.f32.gmra.mrb[0].mxu0 %v201
        %v287 = vpop.f32.mrb[0].mxu0
        %v288 = vadd.f32 0.0, %v287
        %v289 = vpop.f32.mrb[0].mxu0
        %290 = vdwg.mxu0
        %v291 = vmul.f32 %v273, 14.285714
        %v292 = vmul.f32 %v278, 14.285714
        %v293 = vmul.f32 %v283, 14.285714
        %v294 = vmul.f32 %v288, 14.285714
        %s295 = smul.u32 %s24, 32
        %s296 = sadd.s32 %s295, 32
        %p297 = scmp.lt.s32.totalorder %s196, %s296
        %s298 = sadd.s32 %s196, 32
        %p299 = scmp.lt.s32.totalorder %s295, %s298
        %p300 = pnand %p297, %p299
        %p301 = pneg %p300
        // Predicated region
        $region41: #{tpu_custom_call.1} parent=27 // pred_check
          _
        $region42: #{tpu_custom_call.1} parent=27 // pred_check_branch
          %303 = sbr.rel (%p300) target = $region44
        $region43: #{tpu_custom_call.1} parent=27 // pred_region
          %v304 = vlaneseq
          %v305 = vshrl.u32 %v304, 7
          %v306 = vadd.s32 %v305, 8
          %v307 = vadd.s32 %v305, 16
          %v308 = vadd.s32 %v305, 24
          %v309 = vstv %s196
          %v310 = vadd.s32 %v309, %v305
          %v311 = vadd.s32 %v309, %v306
          %v312 = vadd.s32 %v309, %v307
          %v313 = vadd.s32 %v309, %v308
          %v314 = vlaneseq
          %v315 = vand.u32 %v314, 127
          %v316 = vstv %s295
          %v317 = vadd.s32 %v316, %v315
          %vm318 = vcmp.eq.s32.totalorder %v310, %v317
          %vm319 = vcmp.eq.s32.totalorder %v311, %v317
          %vm320 = vcmp.eq.s32.totalorder %v312, %v317
          %vm321 = vcmp.eq.s32.totalorder %v313, %v317
          %v322 = vsel %vm318, -1e+30, %v291
          %v323 = vsel %vm319, -1e+30, %v292
          %v324 = vsel %vm320, -1e+30, %v293
          %v325 = vsel %vm321, -1e+30, %v294
          %v326 = vld [vmem:[#allocation2] sm:$0x1]
          %vm327 = vcmask 261120
          %v328 = vsel %vm327, %v322, -inf
          %v329 = vsel %vm327, %v323, -inf
          %v330 = vsel %vm327, %v324, -inf
          %v331 = vsel %vm327, %v325, -inf
          %v332 = vmax.f32 %v328, %v329
          %v333 = vmax.f32 %v330, %v331
          %v334 = vmax.f32 %v332, %v333
          %v335 = vrot.slane %v334, 4
          %v336 = vmax.f32 %v334, %v335
          %v337 = vrot.slane %v336, 2
          %v338 = vmax.f32 %v336, %v337
          %v339 = vrot.slane %v338, 1
          %v340 = vmax.f32 %v338, %v339
          %v341 = vmax.f32 %v326, %v340
          %v342 = vsub.f32 %v326, %v341
          %v343 = vmul.f32 %v342, 1.442695
          %v344 = vpow.pop %v343
          %v345 = vld [vmem:[#allocation3] sm:$0x1]
          %v346 = vmul.f32 %v344, %v345
          %v348 = vlaneseq
          %v349 = vshrl.u32 %v348, 7
          %v350 = vsub.s32 0, %v349
          %v351 = vrot.slane %v341, %v350
          %v353 = vsub.f32 %v322, %v351
          %v354 = vsub.f32 %v323, %v351
          %v355 = vsub.f32 %v324, %v351
          %v356 = vsub.f32 %v325, %v351
          %v357 = vmul.f32 %v353, 1.442695
          %v358 = vpow.pop %v357
          %v359 = vmul.f32 %v354, 1.442695
          %v360 = vpow.pop %v359
          %v361 = vmul.f32 %v355, 1.442695
          %v362 = vpow.pop %v361
          %v363 = vmul.f32 %v356, 1.442695
          %v364 = vpow.pop %v363
          %v365 = vsel %vm327, %v358, 0.0
          %v366 = vsel %vm327, %v360, 0.0
          %v367 = vadd.f32 %v365, %v366
          %v368 = vsel %vm327, %v362, 0.0
          %v369 = vadd.f32 %v367, %v368
          %v370 = vsel %vm327, %v364, 0.0
          %v371 = vadd.f32 %v369, %v370
          %v372 = vrot.slane %v371, 4
          %v373 = vadd.f32 %v371, %v372
          %v374 = vrot.slane %v373, 2
          %v375 = vadd.f32 %v373, %v374
          %v376 = vrot.slane %v375, 1
          %v377 = vadd.f32 %v375, %v376
          %v378 = vadd.f32 %v346, %v377
          %vm379 = vcmask 253952
          %380 = vst.msk [vmem:[#allocation3] sm:$0x1] %vm379, %v378
          %381 = vst.msk [vmem:[#allocation2] sm:$0x1] %vm379, %v341
        $region44: #{tpu_custom_call.1} parent=27 // pred_fallthru
          _
        %p382 = pneg %p301
        // Predicated region
        $region45: #{tpu_custom_call.1} parent=27 // pred_check
          _
        $region46: #{tpu_custom_call.1} parent=27 // pred_check_branch
          %384 = sbr.rel (%p301) target = $region48
        $region47: #{tpu_custom_call.1} parent=27 // pred_region
          %v385 = vld [vmem:[#allocation2] sm:$0x1]
          %vm386 = vcmask 261120
          %v387 = vsel %vm386, %v291, -inf
          %v388 = vsel %vm386, %v292, -inf
          %v389 = vsel %vm386, %v293, -inf
          %v390 = vsel %vm386, %v294, -inf
          %v391 = vmax.f32 %v387, %v388
          %v392 = vmax.f32 %v389, %v390
          %v393 = vmax.f32 %v391, %v392
          %v394 = vrot.slane %v393, 4
          %v395 = vmax.f32 %v393, %v394
          %v396 = vrot.slane %v395, 2
          %v397 = vmax.f32 %v395, %v396
          %v398 = vrot.slane %v397, 1
          %v399 = vmax.f32 %v397, %v398
          %v400 = vmax.f32 %v385, %v399
          %v401 = vsub.f32 %v385, %v400
          %v402 = vmul.f32 %v401, 1.442695
          %v403 = vpow.pop %v402
          %v404 = vld [vmem:[#allocation3] sm:$0x1]
          %v405 = vmul.f32 %v403, %v404
          %v407 = vlaneseq
          %v408 = vshrl.u32 %v407, 7
          %v409 = vsub.s32 0, %v408
          %v410 = vrot.slane %v400, %v409
          %v412 = vsub.f32 %v291, %v410
          %v413 = vsub.f32 %v292, %v410
          %v414 = vsub.f32 %v293, %v410
          %v415 = vsub.f32 %v294, %v410
          %v416 = vmul.f32 %v412, 1.442695
          %v417 = vpow.pop %v416
          %v418 = vmul.f32 %v413, 1.442695
          %v419 = vpow.pop %v418
          %v420 = vmul.f32 %v414, 1.442695
          %v421 = vpow.pop %v420
          %v422 = vmul.f32 %v415, 1.442695
          %v423 = vpow.pop %v422
          %v424 = vsel %vm386, %v417, 0.0
          %v425 = vsel %vm386, %v419, 0.0
          %v426 = vadd.f32 %v424, %v425
          %v427 = vsel %vm386, %v421, 0.0
          %v428 = vadd.f32 %v426, %v427
          %v429 = vsel %vm386, %v423, 0.0
          %v430 = vadd.f32 %v428, %v429
          %v431 = vrot.slane %v430, 4
          %v432 = vadd.f32 %v430, %v431
          %v433 = vrot.slane %v432, 2
          %v434 = vadd.f32 %v432, %v433
          %v435 = vrot.slane %v434, 1
          %v436 = vadd.f32 %v434, %v435
          %v437 = vadd.f32 %v405, %v436
          %vm438 = vcmask 253952
          %439 = vst.msk [vmem:[#allocation3] sm:$0x1] %vm438, %v437
          %440 = vst.msk [vmem:[#allocation2] sm:$0x1] %vm438, %v400
        $region48: #{tpu_custom_call.1} parent=27 // pred_fallthru
          _
        %p441 = scmp.eq.s32.totalorder %s25, 3
        // Predicated region
        $region49: #{tpu_custom_call.1} parent=27 // pred_check
          %p442 = pneg %p441
        $region50: #{tpu_custom_call.1} parent=27 // pred_check_branch
          %444 = sbr.rel (%p442) target = $region52
        $region51: #{tpu_custom_call.1} parent=27 // pred_region
          %v445 = vld [vmem:[#allocation2] sm:$0x1]
          %v446 = vld [vmem:[#allocation3] sm:$0x1]
          %v447 = vlog2.pop %v446
          %v448 = vmul.f32 %v447, 0.6931472
          %v449 = vadd.f32 %v445, %v448
          %vm450 = vcmask 253952
          %451 = vst.msk [vmem:[%s187] sm:$0x1] %vm450, %v449
        $region52: #{tpu_custom_call.1} parent=27 // pred_fallthru
          _
        %s452 = sand.u32 %s87, 1
        %s453 = scalar_lea.sflag [#allocation6], %s452
        %s454 = sand.u32 %s87, 1
        %s455 = scalar_lea.vmem [#allocation9], %s454
        // Predicated region
        $region53: #{tpu_custom_call.1} parent=27 // pred_check
          %p456 = pneg %p97
        $region54: #{tpu_custom_call.1} parent=27 // pred_check_branch
          %458 = sbr.rel (%p456) target = $region56
        $region55: #{tpu_custom_call.1} parent=27 // pred_region
          %s460 = ssub.s32 16, 16
          %461 = vsyncadd %s453, %s460
          %s462 = smul.addr %s24, 16
          %s463 = scalar_lea.hbm %s2, %s462
          %s465 = sshll.u32 %s455, 4
          %s466 = int_to_ptr.vmem [resolvable:$true] %s465
          %468 = dma.vmem_to_hbm [thread:$0]  %s466, 16, %s463, %s453
        $region56: #{tpu_custom_call.1} parent=27 // pred_fallthru
          _
      $region28: #{tpu_custom_call.1} parent=5 // pred_fallthru
        _
      %p469 = scmp.le.s32.totalorder 2, %s15
      // Predicated region
      $region57: #{tpu_custom_call.1} parent=5 // pred_check
        %p470 = pneg %p469
      $region58: #{tpu_custom_call.1} parent=5 // pred_check_branch
        %472 = sbr.rel (%p470) target = $region60
      $region59: #{tpu_custom_call.1} parent=5 // pred_region
        %s473 = ssub.s32 %s15, 2
        // Predicated region
        $region61: #{tpu_custom_call.1} parent=59 // pred_check
          %p474 = pneg %p103
        $region62: #{tpu_custom_call.1} parent=59 // pred_check_branch
          %476 = sbr.rel (%p474) target = $region64
        $region63: #{tpu_custom_call.1} parent=59 // pred_region
          %s477 = sand.u32 %s88, 1
          %s478 = scalar_lea.sflag [#allocation6], %s477
          %s479 = sand.u32 %s88, 1
          %s480 = scalar_lea.vmem [#allocation9], %s479
          %481 = dma.done %s478, 16
        $region64: #{tpu_custom_call.1} parent=59 // pred_fallthru
          _
      $region60: #{tpu_custom_call.1} parent=5 // pred_fallthru
        _
    $region6: #{tpu_custom_call.1} parent=1 // loop_footer
      %s19 = sadd.s32 1, %s15
    $region7: #{tpu_custom_call.1} parent=1 // loop_footer_branch
      %14 = sbr.rel target = $region3
    $region8: #{tpu_custom_call.1} parent=1 // loop_exit
      _
    %482 = vsyncpa [#allocation5], 1
    %s483 = scalar_lea.sflag [#allocation5], 1
    %484 = vsyncpa %s483, 1
    %485 = vsyncpa [#allocation8], 1
    %486 = vsyncpa [#allocation6], 1
    %s487 = scalar_lea.sflag [#allocation6], 1
    %488 = vsyncpa %s487, 1

</llo_original>
